<compile_context>
chip_gen: v6e
topology: v6e:2x2x1
jax: 0.10.0
libtpu: 0.0.40
codegen_flags: <defaults>
</compile_context>

<pallas_src>
import jax
import jax.numpy as jnp
from jax.experimental import pallas as pl
from jax.experimental.pallas import tpu as pltpu


def _critic_kernel(obs_ref, act_ref, w1_ref, b1_ref,
                   w2_ref, b2_ref, w3_ref, b3_ref, o_ref):
    # All three layers + ReLUs fused; runs once per batch tile.

    # Layer 1: concat(obs, act) @ W1 as ONE MXU dot. The concat happens on
    # vregs (lane axis) in f32 — no HBM concat, no duplicated K-pass.
    x = jnp.concatenate([obs_ref[...], act_ref[...]], axis=-1)
    x = x.astype(jnp.bfloat16)

    h1 = jnp.dot(x, w1_ref[...], preferred_element_type=jnp.float32)
    h1 = jnp.maximum(h1 + b1_ref[...], 0.0)                       # f32

    # Layer 2
    h2 = jnp.dot(h1.astype(jnp.bfloat16), w2_ref[...],
                 preferred_element_type=jnp.float32)
    h2 = jnp.maximum(h2 + b2_ref[...], 0.0)                       # f32

    # Layer 3 (output width 1 — skinny masked store, hidden under MXU work).
    q = jnp.dot(h2.astype(jnp.bfloat16), w3_ref[...],
                preferred_element_type=jnp.float32)
    o_ref[...] = (q + b3_ref[...]).astype(o_ref.dtype)


def _round_up(x, m):
    return ((x + m - 1) // m) * m


def prepare_critic_params(params):
    """One-time cast: weights -> bf16 (half the DMA bytes), biases stay f32.

    Call this once (outside the per-step jit) and pass the result to
    critic_forward so no per-call HBM f32->bf16 cast op is emitted.
    """
    w1, b1, w2, b2, w3, b3 = params
    return (w1.astype(jnp.bfloat16), b1.astype(jnp.float32),
            w2.astype(jnp.bfloat16), b2.astype(jnp.float32),
            w3.astype(jnp.bfloat16), b3.astype(jnp.float32))


def critic_forward(obs, act, params, *, block_batch=4096):
    """obs: (B, obs_dim) f32, act: (B, act_dim) f32 -> (B, 1) f32."""
    w1, b1, w2, b2, w3, b3 = params
    B, obs_dim = obs.shape
    act_dim = act.shape[1]
    D = obs_dim + act_dim
    H = w2.shape[0]
    assert w1.shape == (D, H), "W1 must be (obs_dim+act_dim, hidden) transposed"

    # No-op if params came from prepare_critic_params; otherwise a fallback
    # cast (weight DMA bytes halved, MXU runs native bf16 rate).
    w1 = w1.astype(jnp.bfloat16)
    w2 = w2.astype(jnp.bfloat16)
    w3 = w3.astype(jnp.bfloat16)

    # Batch tile: multiple of 8 sublanes, as large as possible to amortize the
    # per-grid-step cost, but capped at ceil(B/2) so the "parallel" batch axis
    # has >= 2 steps and v7x's two TensorCores both get work.
    half_b = _round_up(pl.cdiv(B, 2), 8)
    bt = max(8, min(block_batch, half_b))
    grid = (pl.cdiv(B, bt),)

    def batch_spec(d):
        return pl.BlockSpec((bt, d), lambda i: (i, 0))

    def const_spec(shape):
        # Same block index every grid step -> weight stays resident in VMEM.
        return pl.BlockSpec(shape, lambda i: (0, 0))

    flops = 2 * B * (D * H + H * H + H)
    bytes_accessed = (
        (obs.size + act.size + B) * 4                              # f32 in/out
        + (w1.size + w2.size + w3.size) * 2                        # bf16 weights
        + (b1.size + b2.size + b3.size) * 4                        # f32 biases
    )

    return pl.pallas_call(
        _critic_kernel,
        out_shape=jax.ShapeDtypeStruct((B, 1), jnp.float32),
        grid=grid,
        in_specs=[
            batch_spec(obs_dim),          # obs tile
            batch_spec(act_dim),          # act tile
            const_spec((D, H)),           # W1 (unsplit)
            const_spec((1, H)),           # b1
            const_spec((H, H)),           # W2
            const_spec((1, H)),           # b2
            const_spec((H, 1)),           # W3
            const_spec((1, 1)),           # b3
        ],
        out_specs=pl.BlockSpec((bt, 1), lambda i: (i, 0)),
        compiler_params=pltpu.CompilerParams(
            dimension_semantics=("parallel",),
            # Big batch tiles (up to 4096 rows of f32 H-wide intermediates)
            # need ~14 MB live VMEM; 32 MiB scoped is safe on v5e/v6e/v7x.
            vmem_limit_bytes=32 * 1024 * 1024),
        cost_estimate=pl.CostEstimate(
            flops=flops, transcendentals=0, bytes_accessed=bytes_accessed),
    )(obs, act, w1, b1, w2, b2, w3, b3)


def init_critic_params(key, obs_dim, act_dim, hidden_dim=256, dtype=jnp.float32):
    """Deterministic synthetic init mirroring nn.Linear shapes (stored transposed).

    Note: keep hidden_dim a multiple of 128 (256 ideal) in real use so the
    dominant H x H matmul maps exactly onto the MXU; the small test below uses
    32 only to keep shapes tiny.
    """
    input_dim = obs_dim + act_dim
    k1, k2, k3, k4, k5, k6 = jax.random.split(key, 6)

    def lin(kw, kb, fan_in, fan_out):
        bound = 1.0 / jnp.sqrt(fan_in)
        w = jax.random.uniform(kw, (fan_in, fan_out), dtype, -bound, bound)
        b = jax.random.uniform(kb, (1, fan_out), dtype, -bound, bound)
        return w, b

    w1, b1 = lin(k1, k2, input_dim, hidden_dim)
    w2, b2 = lin(k3, k4, hidden_dim, hidden_dim)
    w3, b3 = lin(k5, k6, hidden_dim, 1)
    return (w1, b1, w2, b2, w3, b3)


def _reference(obs, act, params):
    # Matches kernel numerics: bf16 matmul operands, f32 accumulation/bias/ReLU.
    w1, b1, w2, b2, w3, b3 = params
    x = jnp.concatenate([obs, act], axis=-1).astype(jnp.bfloat16)
    h1 = jnp.maximum(
        jnp.dot(x, w1.astype(jnp.bfloat16),
                preferred_element_type=jnp.float32) + b1, 0.0)
    h2 = jnp.maximum(
        jnp.dot(h1.astype(jnp.bfloat16), w2.astype(jnp.bfloat16),
                preferred_element_type=jnp.float32) + b2, 0.0)
    return jnp.dot(h2.astype(jnp.bfloat16), w3.astype(jnp.bfloat16),
                   preferred_element_type=jnp.float32) + b3


if __name__ == "__main__":
    # Small shapes consistent with the module's forward.
    batch, obs_dim, act_dim, hidden_dim = 8, 16, 8, 32

    key = jax.random.PRNGKey(0)
    k_obs, k_act, k_par = jax.random.split(key, 3)
    obs = jax.random.normal(k_obs, (batch, obs_dim), jnp.float32)
    act = jax.random.normal(k_act, (batch, act_dim), jnp.float32)
    params = init_critic_params(k_par, obs_dim, act_dim, hidden_dim)
    prepared = prepare_critic_params(params)   # one-time bf16 weight cast

    q = critic_forward(obs, act, prepared)
    jax.block_until_ready(q)

    q_ref = _reference(obs, act, params)
    assert q.shape == (batch, 1)
    assert jnp.allclose(q, q_ref, atol=1e-2, rtol=1e-2), (
        f"max abs err {jnp.max(jnp.abs(q - q_ref))}")
    print("KERNEL_OK")
</pallas_src>

<mosaic_0001>
module attributes {stable_mosaic.version = 11 : i64} {
  func.func @_critic_kernel(%arg0: i32, %arg1: memref<8x16xf32, #tpu.memory_space<vmem>>, %arg2: memref<8x8xf32, #tpu.memory_space<vmem>>, %arg3: memref<24x32xbf16, #tpu.memory_space<vmem>>, %arg4: memref<1x32xf32, #tpu.memory_space<vmem>>, %arg5: memref<32x32xbf16, #tpu.memory_space<vmem>>, %arg6: memref<1x32xf32, #tpu.memory_space<vmem>>, %arg7: memref<32x1xbf16, #tpu.memory_space<vmem>>, %arg8: memref<1x1xf32, #tpu.memory_space<vmem>>, %arg9: memref<8x1xf32, #tpu.memory_space<vmem>>) attributes {dimension_semantics = [#tpu.dimension_semantics<parallel>], iteration_bounds = array<i64: 1>, scalar_prefetch = 0 : i64, scratch_operands = 0 : i64, tpu.core_type = #tpu.core_type<tc>, window_params = [{transform_indices = @transform_0, window_bounds = array<i64: 8, 16>}, {transform_indices = @transform_1, window_bounds = array<i64: 8, 8>}, {pipeline_mode = #tpu.pipeline_mode<synchronous>, transform_indices = @transform_2, window_bounds = array<i64: 24, 32>}, {pipeline_mode = #tpu.pipeline_mode<synchronous>, transform_indices = @transform_3, window_bounds = array<i64: 1, 32>}, {pipeline_mode = #tpu.pipeline_mode<synchronous>, transform_indices = @transform_4, window_bounds = array<i64: 32, 32>}, {pipeline_mode = #tpu.pipeline_mode<synchronous>, transform_indices = @transform_5, window_bounds = array<i64: 1, 32>}, {pipeline_mode = #tpu.pipeline_mode<synchronous>, transform_indices = @transform_6, window_bounds = array<i64: 32, 1>}, {pipeline_mode = #tpu.pipeline_mode<synchronous>, transform_indices = @transform_7, window_bounds = array<i64: 1, 1>}, {transform_indices = @transform_8, window_bounds = array<i64: 8, 1>}]} {
    %c0 = arith.constant 0 : index
    %c0_0 = arith.constant 0 : index
    %0 = vector.load %arg1[%c0, %c0_0] : memref<8x16xf32, #tpu.memory_space<vmem>>, vector<8x16xf32>
    %c0_1 = arith.constant 0 : index
    %c0_2 = arith.constant 0 : index
    %1 = vector.load %arg2[%c0_1, %c0_2] : memref<8x8xf32, #tpu.memory_space<vmem>>, vector<8x8xf32>
    %2 = tpu.concatenate %0, %1 in 1 : vector<8x16xf32>, vector<8x8xf32> -> vector<8x24xf32>
    %3 = arith.truncf %2 : vector<8x24xf32> to vector<8x24xbf16>
    %c0_3 = arith.constant 0 : index
    %c0_4 = arith.constant 0 : index
    %4 = vector.load %arg3[%c0_3, %c0_4] : memref<24x32xbf16, #tpu.memory_space<vmem>>, vector<24x32xbf16>
    %cst = arith.constant dense<0.000000e+00> : vector<8x32xf32>
    %5 = tpu.matmul %3, %4, %cst {dimension_numbers = #tpu.dot_dimension_numbers<[1], [0], [0], [1], [0, 0, 1, 1], [], []>} : vector<8x24xbf16>, vector<24x32xbf16>, vector<8x32xf32> -> vector<8x32xf32>
    %c0_5 = arith.constant 0 : index
    %c0_6 = arith.constant 0 : index
    %6 = vector.load %arg4[%c0_5, %c0_6] : memref<1x32xf32, #tpu.memory_space<vmem>>, vector<1x32xf32>
    %7 = vector.broadcast %6 : vector<1x32xf32> to vector<8x32xf32>
    %8 = arith.addf %5, %7 : vector<8x32xf32>
    %cst_7 = arith.constant 0.000000e+00 : f32
    %9 = vector.broadcast %cst_7 : f32 to vector<8x32xf32>
    %10 = arith.maximumf %8, %9 : vector<8x32xf32>
    %11 = arith.truncf %10 : vector<8x32xf32> to vector<8x32xbf16>
    %c0_8 = arith.constant 0 : index
    %c0_9 = arith.constant 0 : index
    %12 = vector.load %arg5[%c0_8, %c0_9] : memref<32x32xbf16, #tpu.memory_space<vmem>>, vector<32x32xbf16>
    %cst_10 = arith.constant dense<0.000000e+00> : vector<8x32xf32>
    %13 = tpu.matmul %11, %12, %cst_10 {dimension_numbers = #tpu.dot_dimension_numbers<[1], [0], [0], [1], [0, 0, 1, 1], [], []>} : vector<8x32xbf16>, vector<32x32xbf16>, vector<8x32xf32> -> vector<8x32xf32>
    %c0_11 = arith.constant 0 : index
    %c0_12 = arith.constant 0 : index
    %14 = vector.load %arg6[%c0_11, %c0_12] : memref<1x32xf32, #tpu.memory_space<vmem>>, vector<1x32xf32>
    %15 = vector.broadcast %14 : vector<1x32xf32> to vector<8x32xf32>
    %16 = arith.addf %13, %15 : vector<8x32xf32>
    %cst_13 = arith.constant 0.000000e+00 : f32
    %17 = vector.broadcast %cst_13 : f32 to vector<8x32xf32>
    %18 = arith.maximumf %16, %17 : vector<8x32xf32>
    %19 = arith.truncf %18 : vector<8x32xf32> to vector<8x32xbf16>
    %c0_14 = arith.constant 0 : index
    %c0_15 = arith.constant 0 : index
    %20 = vector.load %arg7[%c0_14, %c0_15] : memref<32x1xbf16, #tpu.memory_space<vmem>>, vector<32x1xbf16>
    %cst_16 = arith.constant dense<0.000000e+00> : vector<8x1xf32>
    %21 = tpu.matmul %19, %20, %cst_16 {dimension_numbers = #tpu.dot_dimension_numbers<[1], [0], [0], [1], [0, 0, 1, 1], [], []>} : vector<8x32xbf16>, vector<32x1xbf16>, vector<8x1xf32> -> vector<8x1xf32>
    %c0_17 = arith.constant 0 : index
    %c0_18 = arith.constant 0 : index
    %22 = vector.load %arg8[%c0_17, %c0_18] : memref<1x1xf32, #tpu.memory_space<vmem>>, vector<1x1xf32>
    %23 = vector.broadcast %22 : vector<1x1xf32> to vector<8x1xf32>
    %24 = arith.addf %21, %23 : vector<8x1xf32>
    %c0_19 = arith.constant 0 : index
    %c0_20 = arith.constant 0 : index
    %25 = vector.load %arg9[%c0_19, %c0_20] : memref<8x1xf32, #tpu.memory_space<vmem>>, vector<8x1xf32>
    tpu.vector_store %arg9[%c0_19, %c0_20], %24 {strides = array<i32>} : memref<8x1xf32, #tpu.memory_space<vmem>>, vector<8x1xf32>,
    return
  }
  func.func @transform_0(%arg0: i32) -> (i32, i32) {
    %c0_i32 = arith.constant 0 : i32
    %c0_i32_0 = arith.constant 0 : i32
    return %arg0, %c0_i32 : i32, i32
  }
  func.func @transform_1(%arg0: i32) -> (i32, i32) {
    %c0_i32 = arith.constant 0 : i32
    %c0_i32_0 = arith.constant 0 : i32
    return %arg0, %c0_i32 : i32, i32
  }
  func.func @transform_2(%arg0: i32) -> (i32, i32) {
    %c0_i32 = arith.constant 0 : i32
    %c0_i32_0 = arith.constant 0 : i32
    %c0_i32_1 = arith.constant 0 : i32
    return %c0_i32, %c0_i32_0 : i32, i32
  }
  func.func @transform_3(%arg0: i32) -> (i32, i32) {
    %c0_i32 = arith.constant 0 : i32
    %c0_i32_0 = arith.constant 0 : i32
    %c0_i32_1 = arith.constant 0 : i32
    return %c0_i32, %c0_i32_0 : i32, i32
  }
  func.func @transform_4(%arg0: i32) -> (i32, i32) {
    %c0_i32 = arith.constant 0 : i32
    %c0_i32_0 = arith.constant 0 : i32
    %c0_i32_1 = arith.constant 0 : i32
    return %c0_i32, %c0_i32_0 : i32, i32
  }
  func.func @transform_5(%arg0: i32) -> (i32, i32) {
    %c0_i32 = arith.constant 0 : i32
    %c0_i32_0 = arith.constant 0 : i32
    %c0_i32_1 = arith.constant 0 : i32
    return %c0_i32, %c0_i32_0 : i32, i32
  }
  func.func @transform_6(%arg0: i32) -> (i32, i32) {
    %c0_i32 = arith.constant 0 : i32
    %c0_i32_0 = arith.constant 0 : i32
    %c0_i32_1 = arith.constant 0 : i32
    return %c0_i32, %c0_i32_0 : i32, i32
  }
  func.func @transform_7(%arg0: i32) -> (i32, i32) {
    %c0_i32 = arith.constant 0 : i32
    %c0_i32_0 = arith.constant 0 : i32
    %c0_i32_1 = arith.constant 0 : i32
    return %c0_i32, %c0_i32_0 : i32, i32
  }
  func.func @transform_8(%arg0: i32) -> (i32, i32) {
    %c0_i32 = arith.constant 0 : i32
    %c0_i32_0 = arith.constant 0 : i32
    return %arg0, %c0_i32 : i32, i32
  }
}

</mosaic_0001>

<llo_original>
// kernel: tpu_custom_call.1
$region0: #{tpu_custom_call.1}
  #allocation0 [shape = 'u32[]', space=smem, size = 0x4, offset = 0x4, fixed_abs, tag = 'smem constant byte address 0x4 - core index']
  #allocation1 [shape = 'u32[144,128]{1,0:T(1,128)}', space=vmem, size = 0x12000, scoped, tag = 'internal scratch']
  #allocation2 [shape = 'f32[1,1]{1,0:T(1,128)S(1)}', space=vmem, size = 0x200, scoped, tag = 'scoped memory for tpu_custom_call.1']
  %s0 = inlined_call_operand.vmem [shape: f32[8,16], index: 0, kind: input, shape index: {}]
  %s1 = inlined_call_operand.hbm [shape: f32[8,8], index: 1, kind: input, shape index: {}]
  %s2 = inlined_call_operand.hbm [shape: bf16[24,32], index: 2, kind: input, shape index: {}]
  %s3 = inlined_call_operand.vmem [shape: f32[1,32], index: 3, kind: input, shape index: {}]
  %s4 = inlined_call_operand.vmem [shape: bf16[32,32], index: 4, kind: input, shape index: {}]
  %s5 = inlined_call_operand.vmem [shape: f32[1,32], index: 5, kind: input, shape index: {}]
  %s6 = inlined_call_operand.vmem [shape: bf16[32,1], index: 6, kind: input, shape index: {}]
  %s7 = inlined_call_operand.<no memory space> [shape: f32[1,1], index: 7, kind: input, shape index: {}]
  %s8 = inlined_call_operand.vmem [shape: f32[8,1], index: 8, kind: output, shape index: {}]
  %s9 = sld [smem:[#allocation0]]
  $region50: #{tpu_custom_call.1} parent=0
    _
  %s11 = ssub.s32 1, %s9
  %s12 = scalar_select 0, %s11, %s9
  %v13 = vstv %s7
  %14 = vst [vmem:[#allocation2] sm:$0x1] %v13
  $region1: #{tpu_custom_call.1} parent=0
    #allocation3 [shape = 'u8[4096]{0}', space=vmem, size = 0x1000, scoped, tag = 'input window, operand 1, single buffered']
    #allocation4 [shape = 's32[1]{0}', space=sflag, size = 0x4, scoped, tag = 'scoped memory for tpu_custom_call.1']
    #allocation5 [shape = 'u8[6144]{0}', space=vmem, size = 0x1800, scoped, tag = 'input window, operand 2, single buffered']
    #allocation6 [shape = 's32[1]{0}', space=sflag, size = 0x4, scoped, tag = 'scoped memory for tpu_custom_call.1']
    %15 = vsyncpa [#allocation4], 0
    %16 = vsyncpa [#allocation6], 0
    // Predicated region
    $region2: #{tpu_custom_call.1} parent=1 // pred_check
      _
    $region3: #{tpu_custom_call.1} parent=1 // pred_check_branch
      %18 = sbr.rel (0) target = $region5
    $region4: #{tpu_custom_call.1} parent=1 // pred_region
      _
    $region5: #{tpu_custom_call.1} parent=1 // pred_fallthru
      _
    // Predicated region
    $region6: #{tpu_custom_call.1} parent=1 // pred_check
      _
    $region7: #{tpu_custom_call.1} parent=1 // pred_check_branch
      %20 = sbr.rel (0) target = $region9
    $region8: #{tpu_custom_call.1} parent=1 // pred_region
      %s22 = ssub.s32 128, 128
      %23 = vsyncadd [#allocation4], %s22
      %s25 = sshll.u32 [#allocation3], 4
      %s26 = int_to_ptr.vmem [resolvable:$true] %s25
      %28 = dma.hbm_to_vmem [thread:$0]  %s1, 128, %s26, [#allocation4]
    $region9: #{tpu_custom_call.1} parent=1 // pred_fallthru
      _
    // Predicated region
    $region10: #{tpu_custom_call.1} parent=1 // pred_check
      _
    $region11: #{tpu_custom_call.1} parent=1 // pred_check_branch
      %30 = sbr.rel (0) target = $region13
    $region12: #{tpu_custom_call.1} parent=1 // pred_region
      %s32 = ssub.s32 192, 192
      %33 = vsyncadd [#allocation6], %s32
      %s34 = sshll.u32 [#allocation5], 4
      %s35 = int_to_ptr.vmem [resolvable:$true] %s34
      %40 = dma.hbm_to_vmem [thread:$0]  %s2, 192, %s35, [#allocation6], 64, 64, 4
    $region13: #{tpu_custom_call.1} parent=1 // pred_fallthru
      _
    // Predicated region
    $region14: #{tpu_custom_call.1} parent=1 // pred_check
      _
    $region15: #{tpu_custom_call.1} parent=1 // pred_check_branch
      %42 = sbr.rel (0) target = $region17
    $region16: #{tpu_custom_call.1} parent=1 // pred_region
      _
    $region17: #{tpu_custom_call.1} parent=1 // pred_fallthru
      _
    // Predicated region
    $region18: #{tpu_custom_call.1} parent=1 // pred_check
      _
    $region19: #{tpu_custom_call.1} parent=1 // pred_check_branch
      %44 = sbr.rel (0) target = $region21
    $region20: #{tpu_custom_call.1} parent=1 // pred_region
      _
    $region21: #{tpu_custom_call.1} parent=1 // pred_fallthru
      _
    // Predicated region
    $region22: #{tpu_custom_call.1} parent=1 // pred_check
      _
    $region23: #{tpu_custom_call.1} parent=1 // pred_check_branch
      %46 = sbr.rel (0) target = $region25
    $region24: #{tpu_custom_call.1} parent=1 // pred_region
      _
    $region25: #{tpu_custom_call.1} parent=1 // pred_fallthru
      _
    // Predicated region
    $region26: #{tpu_custom_call.1} parent=1 // pred_check
      _
    $region27: #{tpu_custom_call.1} parent=1 // pred_check_branch
      %48 = sbr.rel (0) target = $region29
    $region28: #{tpu_custom_call.1} parent=1 // pred_region
      _
    $region29: #{tpu_custom_call.1} parent=1 // pred_fallthru
      _
    // Predicated region
    $region30: #{tpu_custom_call.1} parent=1 // pred_check
      _
    $region31: #{tpu_custom_call.1} parent=1 // pred_check_branch
      %50 = sbr.rel (0) target = $region33
    $region32: #{tpu_custom_call.1} parent=1 // pred_region
      _
    $region33: #{tpu_custom_call.1} parent=1 // pred_fallthru
      _
    // Predicated region
    $region34: #{tpu_custom_call.1} parent=1 // pred_check
      _
    $region35: #{tpu_custom_call.1} parent=1 // pred_check_branch
      %52 = sbr.rel (0) target = $region37
    $region36: #{tpu_custom_call.1} parent=1 // pred_region
      %53 = dma.done [#allocation4], 128
    $region37: #{tpu_custom_call.1} parent=1 // pred_fallthru
      _
    // Predicated region
    $region38: #{tpu_custom_call.1} parent=1 // pred_check
      _
    $region39: #{tpu_custom_call.1} parent=1 // pred_check_branch
      %55 = sbr.rel (0) target = $region41
    $region40: #{tpu_custom_call.1} parent=1 // pred_region
      %56 = dma.done [#allocation6], 192
    $region41: #{tpu_custom_call.1} parent=1 // pred_fallthru
      _
    %v58 = vld [vmem:[%s0] sm:$0xff]
    %v59 = vld [vmem:[#allocation3] sm:$0xff]
    %61 = vrot.lane.b32.xlu0 %v59, 16
    %v62 = vpop.permute.xlu0 %61
    %vm64 = vcmask 130048
    %v65 = vsel %vm64, %v58, %v62
    %v66 = vpack.c.bf16 %v65, %v65
    %v67 = vld [vmem:[#allocation5] sm:$0xf]
    %v68 = vld [vmem:[#allocation5 + $0x4] sm:$0xf]
    %v69 = vld [vmem:[#allocation5 + $0x8] sm:$0xf]
    %v70 = vld [vmem:[%s3] sm:$0x1]
    %v72 = vlaneseq
    %v73 = vshrl.u32 %v72, 7
    %v74 = vsub.s32 0, %v73
    %v75 = vrot.slane %v70, %v74
    %v80 = vunpack.c.l.b16 %v67
    %v81 = vunpack.c.l.b16 %v68
    %v82 = vunpack.c.l.b16 %v69
    %v83 = vpack.c.b16 %v81, %v80
    %v84 = vpack.c.b16 %v82, %v82
    %vm86 = vcmask 195584
    %v88 = vsel %vm86, %v66, 0
    %vm90 = vcmask 1043456
    %v92 = vsel %vm90, %v84, 0
    %94 = vmatprep.subr.bf16.mxu0 0
    %95 = vmatpush1.bf16.msra.mxu0 0
    %96 = vmatprep.subr.bf16.mxu0 0
    %97 = vmatpush1.bf16.msra.mxu0 0
    %98 = vmatprep.subr.bf16.mxu0 0
    %99 = vmatpush1.bf16.msra.mxu0 0
    %100 = vmatprep.subr.bf16.mxu0 0
    %101 = vmatpush1.bf16.msra.mxu0 0
    %102 = vmatprep.subr.bf16.mxu0 0
    %103 = vmatpush1.bf16.msra.mxu0 0
    %104 = vmatprep.subr.bf16.mxu0 0
    %105 = vmatpush1.bf16.msra.mxu0 0
    %106 = vmatprep.subr.bf16.mxu0 0
    %107 = vmatpush1.bf16.msra.mxu0 %v92
    %108 = vmatprep.subr.bf16.mxu0 0
    %109 = vmatpush1.bf16.msra.mxu0 %v83
    %110 = vmatprep.subr.bf16.mxu0 0
    %111 = vmatpush2.bf16.msra.mxu0 0
    %112 = vmatprep.subr.bf16.mxu0 0
    %113 = vmatpush2.bf16.msra.mxu0 0
    %114 = vmatprep.subr.bf16.mxu0 0
    %115 = vmatpush2.bf16.msra.mxu0 0
    %116 = vmatprep.subr.bf16.mxu0 0
    %117 = vmatpush2.bf16.msra.mxu0 0
    %118 = vmatprep.subr.bf16.mxu0 0
    %119 = vmatpush2.bf16.msra.mxu0 0
    %120 = vmatprep.subr.bf16.mxu0 0
    %121 = vmatpush2.bf16.msra.mxu0 0
    %122 = vmatprep.subr.bf16.mxu0 0
    %123 = vmatpush2.bf16.msra.mxu0 0
    %124 = vmatprep.subr.bf16.mxu0 0
    %125 = vmatpush2.bf16.msra.mxu0 0
    %126 = vmatprep.mubr.bf16.mxu0 0
    %127 = vmatmul.mubr.bf16.gmra.mxu0 %v88
    %v128 = vpop.f32.mrf.mxu0
    %v129 = vadd.f32 %v75, %v128
    %v130 = vpop.f32.mrf.mxu0
    %v131 = vpop.f32.mrf.mxu0
    %v132 = vpop.f32.mrf.mxu0
    %133 = vdwg.mxu0
    %v134 = vmax.f32 %v129, 0.0
    %v135 = vpack.c.bf16 %v134, %v134
    %v136 = vld [vmem:[%s4] sm:$0xf]
    %v137 = vld [vmem:[%s4 + $0x4] sm:$0xf]
    %v138 = vld [vmem:[%s4 + $0x8] sm:$0xf]
    %v139 = vld [vmem:[%s4 + $0xc] sm:$0xf]
    %v140 = vld [vmem:[%s5] sm:$0x1]
    %v142 = vlaneseq
    %v143 = vshrl.u32 %v142, 7
    %v144 = vsub.s32 0, %v143
    %v145 = vrot.slane %v140, %v144
    %v151 = vunpack.c.l.b16 %v136
    %v152 = vunpack.c.l.b16 %v137
    %v153 = vunpack.c.l.b16 %v138
    %v154 = vunpack.c.l.b16 %v139
    %v155 = vpack.c.b16 %v152, %v151
    %v156 = vpack.c.b16 %v154, %v153
    %vm159 = vcmask 261120
    %v161 = vsel %vm159, %v135, 0
    %163 = vmatprep.subr.bf16.mxu0 0
    %164 = vmatpush1.bf16.msra.mxu0 0
    %165 = vmatprep.subr.bf16.mxu0 0
    %166 = vmatpush1.bf16.msra.mxu0 0
    %167 = vmatprep.subr.bf16.mxu0 0
    %168 = vmatpush1.bf16.msra.mxu0 0
    %169 = vmatprep.subr.bf16.mxu0 0
    %170 = vmatpush1.bf16.msra.mxu0 0
    %171 = vmatprep.subr.bf16.mxu0 0
    %172 = vmatpush1.bf16.msra.mxu0 0
    %173 = vmatprep.subr.bf16.mxu0 0
    %174 = vmatpush1.bf16.msra.mxu0 0
    %175 = vmatprep.subr.bf16.mxu0 0
    %176 = vmatpush1.bf16.msra.mxu0 %v156
    %177 = vmatprep.subr.bf16.mxu0 0
    %178 = vmatpush1.bf16.msra.mxu0 %v155
    %179 = vmatprep.subr.bf16.mxu0 0
    %180 = vmatpush2.bf16.msra.mxu0 0
    %181 = vmatprep.subr.bf16.mxu0 0
    %182 = vmatpush2.bf16.msra.mxu0 0
    %183 = vmatprep.subr.bf16.mxu0 0
    %184 = vmatpush2.bf16.msra.mxu0 0
    %185 = vmatprep.subr.bf16.mxu0 0
    %186 = vmatpush2.bf16.msra.mxu0 0
    %187 = vmatprep.subr.bf16.mxu0 0
    %188 = vmatpush2.bf16.msra.mxu0 0
    %189 = vmatprep.subr.bf16.mxu0 0
    %190 = vmatpush2.bf16.msra.mxu0 0
    %191 = vmatprep.subr.bf16.mxu0 0
    %192 = vmatpush2.bf16.msra.mxu0 0
    %193 = vmatprep.subr.bf16.mxu0 0
    %194 = vmatpush2.bf16.msra.mxu0 0
    %195 = vmatprep.mubr.bf16.mxu0 0
    %196 = vmatmul.mubr.bf16.gmra.mxu0 %v161
    %v197 = vpop.f32.mrf.mxu0
    %v198 = vadd.f32 %v145, %v197
    %v199 = vpop.f32.mrf.mxu0
    %v200 = vpop.f32.mrf.mxu0
    %v201 = vpop.f32.mrf.mxu0
    %202 = vdwg.mxu0
    %v203 = vmax.f32 %v198, 0.0
    %v204 = vpack.c.bf16 %v203, %v203
    %v205 = vld [vmem:[%s6] sm:$0xf]
    %v206 = vld [vmem:[%s6 + $0x4] sm:$0xf]
    %v207 = vld [vmem:[%s6 + $0x8] sm:$0xf]
    %v208 = vld [vmem:[%s6 + $0xc] sm:$0xf]
    %v209 = vld [vmem:[#allocation2] sm:$0x1]
    %v211 = vlaneseq
    %v212 = vshrl.u32 %v211, 7
    %v213 = vsub.s32 0, %v212
    %v214 = vrot.slane %v209, %v213
    %v220 = vunpack.c.l.b16 %v205
    %v221 = vunpack.c.l.b16 %v206
    %v222 = vunpack.c.l.b16 %v207
    %v223 = vunpack.c.l.b16 %v208
    %v224 = vpack.c.b16 %v221, %v220
    %v225 = vpack.c.b16 %v223, %v222
    %v229 = vsel %vm159, %v204, 0
    %231 = vmatprep.subr.bf16.mxu0 0
    %232 = vmatpush1.bf16.msra.mxu0 0
    %233 = vmatprep.subr.bf16.mxu0 0
    %234 = vmatpush1.bf16.msra.mxu0 0
    %235 = vmatprep.subr.bf16.mxu0 0
    %236 = vmatpush1.bf16.msra.mxu0 0
    %237 = vmatprep.subr.bf16.mxu0 0
    %238 = vmatpush1.bf16.msra.mxu0 0
    %239 = vmatprep.subr.bf16.mxu0 0
    %240 = vmatpush1.bf16.msra.mxu0 0
    %241 = vmatprep.subr.bf16.mxu0 0
    %242 = vmatpush1.bf16.msra.mxu0 0
    %243 = vmatprep.subr.bf16.mxu0 0
    %244 = vmatpush1.bf16.msra.mxu0 %v225
    %245 = vmatprep.subr.bf16.mxu0 0
    %246 = vmatpush1.bf16.msra.mxu0 %v224
    %247 = vmatprep.subr.bf16.mxu0 0
    %248 = vmatpush2.bf16.msra.mxu0 0
    %249 = vmatprep.subr.bf16.mxu0 0
    %250 = vmatpush2.bf16.msra.mxu0 0
    %251 = vmatprep.subr.bf16.mxu0 0
    %252 = vmatpush2.bf16.msra.mxu0 0
    %253 = vmatprep.subr.bf16.mxu0 0
    %254 = vmatpush2.bf16.msra.mxu0 0
    %255 = vmatprep.subr.bf16.mxu0 0
    %256 = vmatpush2.bf16.msra.mxu0 0
    %257 = vmatprep.subr.bf16.mxu0 0
    %258 = vmatpush2.bf16.msra.mxu0 0
    %259 = vmatprep.subr.bf16.mxu0 0
    %260 = vmatpush2.bf16.msra.mxu0 0
    %261 = vmatprep.subr.bf16.mxu0 0
    %262 = vmatpush2.bf16.msra.mxu0 0
    %263 = vmatprep.mubr.bf16.mxu0 0
    %264 = vmatmul.mubr.bf16.gmra.mxu0 %v229
    %v265 = vpop.f32.mrf.mxu0
    %v266 = vadd.f32 %v214, %v265
    %v267 = vpop.f32.mrf.mxu0
    %v268 = vpop.f32.mrf.mxu0
    %v269 = vpop.f32.mrf.mxu0
    %270 = vdwg.mxu0
    %vm271 = vcmask 7168
    %272 = vst.msk [vmem:[%s8] sm:$0xff] %vm271, %v266
    // Predicated region
    $region42: #{tpu_custom_call.1} parent=1 // pred_check
      _
    $region43: #{tpu_custom_call.1} parent=1 // pred_check_branch
      %274 = sbr.rel (0) target = $region45
    $region44: #{tpu_custom_call.1} parent=1 // pred_region
      _
    $region45: #{tpu_custom_call.1} parent=1 // pred_fallthru
      _
    // Predicated region
    $region46: #{tpu_custom_call.1} parent=1 // pred_check
      _
    $region47: #{tpu_custom_call.1} parent=1 // pred_check_branch
      %276 = sbr.rel (0) target = $region49
    $region48: #{tpu_custom_call.1} parent=1 // pred_region
      _
    $region49: #{tpu_custom_call.1} parent=1 // pred_fallthru
      _
    %277 = vsyncpa [#allocation4], 1
    %278 = vsyncpa [#allocation6], 1

</llo_original>
